<compile_context>
chip_gen: v5e
topology: v5e:2x2
jax: 0.10.0
libtpu: 0.0.40
codegen_flags: <defaults>
</compile_context>

<pallas_src>
import functools

import jax
import jax.numpy as jnp
from jax import lax
from jax.experimental import pallas as pl
from jax.experimental.pallas import tpu as pltpu


def _round_up(n: int, m: int) -> int:
    return -(-n // m) * m


def _pick_tile_rows(rows: int, width: int, itemsize: int,
                    vmem_budget: int = 16 << 20) -> int:
    """Rows per grid step for the row-tiled elementwise kernels.

    Big blocks (~1-2 MiB) for HBM roofline, but never a single grid step:
    aim for >= 4 steps so double-buffering overlaps DMA/compute and the
    "parallel" grid axis can shard across both v7x TensorCores."""
    per_row = 6 * width * itemsize                       # ~3 live arrays x 2 pipeline buffers
    cap = max(8, min(4096, (vmem_budget // per_row) // 8 * 8))
    target = max(8, _round_up(-(-rows // 4), 8))         # ~4 grid steps, multiple of 8
    return min(cap, target)


def _lane_dense_shape(total: int, d: int):
    """(rows, width) factorization with width a multiple of 128 when possible."""
    if d % 128 == 0:
        return total // d, d
    for w in (1024, 512, 256, 128):
        if total % w == 0:
            return total // w, w
    # TODO(synk): width not a multiple of 128 -> masked partial stores (vst.msk).
    return total // d, d


# ----------------------------- LayerNorm kernel ------------------------------

def _layernorm_kernel(x_ref, a_ref, b_ref, o_ref, *, eps: float, inv_nm1: float):
    x = x_ref[...].astype(jnp.float32)                                   # (T, D)
    mean = jnp.mean(x, axis=-1, keepdims=True)
    diff = x - mean
    var = jnp.sum(diff * diff, axis=-1, keepdims=True) * inv_nm1         # unbiased (torch.std)
    inv = 1.0 / (jnp.sqrt(var) + eps)                                    # one divide per ROW
    o_ref[...] = (diff * inv * a_ref[...] + b_ref[...]).astype(o_ref.dtype)


def _layernorm(x2: jax.Array, a_2: jax.Array, b_2: jax.Array, eps: float) -> jax.Array:
    rows, d = x2.shape
    tile = _pick_tile_rows(rows, d, jnp.dtype(x2.dtype).itemsize)
    grid = (pl.cdiv(rows, tile),)
    a2 = a_2.reshape(1, d).astype(jnp.float32)
    b2 = b_2.reshape(1, d).astype(jnp.float32)
    kernel = functools.partial(
        _layernorm_kernel, eps=float(eps), inv_nm1=(1.0 / (d - 1)) if d > 1 else 0.0)
    return pl.pallas_call(
        kernel,
        out_shape=jax.ShapeDtypeStruct((rows, d), x2.dtype),
        grid=grid,
        in_specs=[
            pl.BlockSpec((tile, d), lambda i: (i, 0)),   # x row tile
            pl.BlockSpec((1, d), lambda i: (0, 0)),      # a_2 resident
            pl.BlockSpec((1, d), lambda i: (0, 0)),      # b_2 resident
        ],
        out_specs=pl.BlockSpec((tile, d), lambda i: (i, 0)),
        compiler_params=pltpu.CompilerParams(
            dimension_semantics=("parallel",), vmem_limit_bytes=32 << 20),
    )(x2, a2, b2)


# ------------------------ residual (+ fused dropout) -------------------------

def _residual_add_kernel(x_ref, y_ref, o_ref):
    o_ref[...] = x_ref[...] + y_ref[...]


def _residual_dropout_kernel(seed_ref, x_ref, y_ref, o_ref, *,
                             p: float, tile_rows: int, width: int):
    shape = x_ref.shape
    # Global element index (tile-size invariant), counter-based hash -> uniform u32.
    r = lax.broadcasted_iota(jnp.int32, shape, 0).astype(jnp.uint32)
    c = lax.broadcasted_iota(jnp.int32, shape, 1).astype(jnp.uint32)
    base = (pl.program_id(0) * tile_rows).astype(jnp.uint32)
    gidx = (base + r) * jnp.uint32(width) + c
    seed = seed_ref[...].astype(jnp.uint32)                              # (1, 1), broadcasts
    h = gidx ^ (seed * jnp.uint32(0x9E3779B9))
    h = (h ^ (h >> 16)) * jnp.uint32(0x7FEB352D)                         # splitmix32-style mix
    h = (h ^ (h >> 15)) * jnp.uint32(0x846CA68B)
    h = h ^ (h >> 16)
    thr = jnp.uint32(min(0xFFFFFFFF, int(round(p * 4294967296.0))))
    keep = h >= thr                                                      # P(keep) = 1 - p
    # Math in the I/O dtype (no f32 upcast needed; fine for f32 and bf16).
    scale = jnp.asarray(1.0 / (1.0 - p), x_ref.dtype)
    y = y_ref[...]
    o_ref[...] = x_ref[...] + jnp.where(keep, y * scale, jnp.zeros_like(y))


def _residual(x2, y2, dropout_p, training, seed):
    rows, w = x2.shape
    tile = _pick_tile_rows(rows, w, jnp.dtype(x2.dtype).itemsize)
    grid = (pl.cdiv(rows, tile),)
    row_spec = pl.BlockSpec((tile, w), lambda i: (i, 0))
    params = pltpu.CompilerParams(
        dimension_semantics=("parallel",), vmem_limit_bytes=32 << 20)

    if (not training) or dropout_p <= 0.0:
        return pl.pallas_call(
            _residual_add_kernel,
            out_shape=jax.ShapeDtypeStruct((rows, w), x2.dtype),
            grid=grid, in_specs=[row_spec, row_spec], out_specs=row_spec,
            compiler_params=params,
        )(x2, y2)

    kernel = functools.partial(_residual_dropout_kernel,
                               p=float(dropout_p), tile_rows=tile, width=w)
    seed_arr = jnp.full((1, 1), seed, dtype=jnp.int32)
    seed_spec = pl.BlockSpec((1, 1), lambda i: (0, 0))                   # resident seed block
    return pl.pallas_call(
        kernel,
        out_shape=jax.ShapeDtypeStruct((rows, w), x2.dtype),
        grid=grid, in_specs=[seed_spec, row_spec, row_spec], out_specs=row_spec,
        compiler_params=params,
    )(seed_arr, x2, y2)


# ------------------------------- module wrapper -------------------------------

def sublayer_connection(x, a_2, b_2, sublayer, *, dropout_p=0.1, eps=1e-7,
                        training=False, seed=0):
    """Pallas SublayerConnection: (x + dropout(sublayer(LayerNorm(x))[0]), sublayer(...)[1])."""
    orig_shape = x.shape
    d = orig_shape[-1]
    rows = x.size // d
    x2 = x.reshape(rows, d)

    normed = _layernorm(x2, a_2, b_2, eps).reshape(orig_shape)

    # TODO(synk): `sublayer` is an arbitrary user callable (attention/FFN in concare);
    # it runs as plain JAX between the two Pallas kernels.
    returned_value = sublayer(normed)
    y = returned_value[0]

    # Lane-dense layout for the purely elementwise residual(+dropout) kernel.
    rr, ww = _lane_dense_shape(x.size, d)
    xr = x.reshape(rr, ww)
    yr = y.reshape(rr, ww).astype(x.dtype)

    out = _residual(xr, yr, dropout_p, training, seed).reshape(orig_shape)
    return out, returned_value[1]


if __name__ == "__main__":
    B, S, D = 2, 8, 128                 # D multiple of 128 -> lane-dense tiles
    dropout_p = 0.1
    eps = 1e-7

    key = jax.random.PRNGKey(0)
    kx, ka, kb = jax.random.split(key, 3)
    x = jax.random.normal(kx, (B, S, D), dtype=jnp.float32)
    a_2 = 1.0 + 0.1 * jax.random.normal(ka, (D,), dtype=jnp.float32)
    b_2 = 0.1 * jax.random.normal(kb, (D,), dtype=jnp.float32)

    def sublayer(z):
        # stand-in for concare's attention sublayer: returns (value, aux) tuple
        return jnp.tanh(z), jnp.mean(z, axis=-1)

    # ---- eval mode (dropout = identity): exact check against plain-JAX reference ----
    out, aux = sublayer_connection(x, a_2, b_2, sublayer,
                                   dropout_p=dropout_p, eps=eps, training=False)
    out = jax.block_until_ready(out)

    def ref_layernorm(v):
        mean = v.mean(-1, keepdims=True)
        var = ((v - mean) ** 2).sum(-1, keepdims=True) / (v.shape[-1] - 1)   # unbiased, like torch.std
        return a_2 * (v - mean) / (jnp.sqrt(var) + eps) + b_2

    ref_y, ref_aux = sublayer(ref_layernorm(x))
    ref_out = x + ref_y
    assert jnp.allclose(out, ref_out, atol=1e-5, rtol=1e-5), "eval-mode mismatch vs reference"
    assert jnp.allclose(aux, ref_aux, atol=1e-5, rtol=1e-5), "aux mismatch vs reference"

    # ---- training mode (fused inverted dropout inside the residual kernel) ----
    out_t, _ = sublayer_connection(x, a_2, b_2, sublayer,
                                   dropout_p=dropout_p, eps=eps, training=True, seed=123)
    out_t = jax.block_until_ready(out_t)
    diff = out_t - x
    scaled = ref_y / (1.0 - dropout_p)
    ok = jnp.logical_or(
        jnp.abs(diff) <= 1e-5,                                   # dropped element
        jnp.abs(diff - scaled) <= 1e-4 + 1e-4 * jnp.abs(scaled)  # kept & rescaled element
    )
    assert bool(jnp.all(jnp.isfinite(out_t))), "non-finite training-mode output"
    assert bool(jnp.all(ok)), "training-mode dropout values outside {0, y/(1-p)}"

    print("KERNEL_OK")
</pallas_src>

<mosaic_0001>
module attributes {stable_mosaic.version = 11 : i64} {
  func.func @_layernorm_kernel(%arg0: i32, %arg1: memref<8x128xf32, #tpu.memory_space<vmem>>, %arg2: memref<1x128xf32, #tpu.memory_space<vmem>>, %arg3: memref<1x128xf32, #tpu.memory_space<vmem>>, %arg4: memref<8x128xf32, #tpu.memory_space<vmem>>) attributes {dimension_semantics = [#tpu.dimension_semantics<parallel>], iteration_bounds = array<i64: 2>, scalar_prefetch = 0 : i64, scratch_operands = 0 : i64, tpu.core_type = #tpu.core_type<tc>, window_params = [{transform_indices = @transform_0, window_bounds = array<i64: 8, 128>}, {pipeline_mode = #tpu.pipeline_mode<synchronous>, transform_indices = @transform_1, window_bounds = array<i64: 1, 128>}, {pipeline_mode = #tpu.pipeline_mode<synchronous>, transform_indices = @transform_2, window_bounds = array<i64: 1, 128>}, {transform_indices = @transform_3, window_bounds = array<i64: 8, 128>}]} {
    %c0 = arith.constant 0 : index
    %c0_0 = arith.constant 0 : index
    %0 = vector.load %arg1[%c0, %c0_0] : memref<8x128xf32, #tpu.memory_space<vmem>>, vector<8x128xf32>
    %cst = arith.constant dense<0.000000e+00> : vector<8xf32>
    %1 = vector.multi_reduction <add>, %0, %cst [1] : vector<8x128xf32> to vector<8xf32>
    %2 = vector.shape_cast %1 : vector<8xf32> to vector<8x1xf32>
    %cst_1 = arith.constant 1.280000e+02 : f32
    %3 = vector.broadcast %cst_1 : f32 to vector<8x1xf32>
    %4 = arith.divf %2, %3 : vector<8x1xf32>
    %5 = vector.broadcast %4 : vector<8x1xf32> to vector<8x128xf32>
    %6 = arith.subf %0, %5 : vector<8x128xf32>
    %7 = arith.mulf %6, %6 : vector<8x128xf32>
    %cst_2 = arith.constant dense<0.000000e+00> : vector<8xf32>
    %8 = vector.multi_reduction <add>, %7, %cst_2 [1] : vector<8x128xf32> to vector<8xf32>
    %9 = vector.shape_cast %8 : vector<8xf32> to vector<8x1xf32>
    %cst_3 = arith.constant 0.00787401571 : f32
    %10 = vector.broadcast %cst_3 : f32 to vector<8x1xf32>
    %11 = arith.mulf %9, %10 : vector<8x1xf32>
    %12 = math.sqrt %11 : vector<8x1xf32>
    %cst_4 = arith.constant 1.000000e-07 : f32
    %13 = vector.broadcast %cst_4 : f32 to vector<8x1xf32>
    %14 = arith.addf %12, %13 : vector<8x1xf32>
    %cst_5 = arith.constant 1.000000e+00 : f32
    %15 = vector.broadcast %cst_5 : f32 to vector<8x1xf32>
    %16 = arith.divf %15, %14 : vector<8x1xf32>
    %17 = vector.broadcast %16 : vector<8x1xf32> to vector<8x128xf32>
    %18 = arith.mulf %6, %17 : vector<8x128xf32>
    %c0_6 = arith.constant 0 : index
    %c0_7 = arith.constant 0 : index
    %19 = vector.load %arg2[%c0_6, %c0_7] : memref<1x128xf32, #tpu.memory_space<vmem>>, vector<1x128xf32>
    %20 = vector.broadcast %19 : vector<1x128xf32> to vector<8x128xf32>
    %21 = arith.mulf %18, %20 : vector<8x128xf32>
    %c0_8 = arith.constant 0 : index
    %c0_9 = arith.constant 0 : index
    %22 = vector.load %arg3[%c0_8, %c0_9] : memref<1x128xf32, #tpu.memory_space<vmem>>, vector<1x128xf32>
    %23 = vector.broadcast %22 : vector<1x128xf32> to vector<8x128xf32>
    %24 = arith.addf %21, %23 : vector<8x128xf32>
    %c0_10 = arith.constant 0 : index
    %c0_11 = arith.constant 0 : index
    %25 = vector.load %arg4[%c0_10, %c0_11] : memref<8x128xf32, #tpu.memory_space<vmem>>, vector<8x128xf32>
    tpu.vector_store %arg4[%c0_10, %c0_11], %24 {strides = array<i32>} : memref<8x128xf32, #tpu.memory_space<vmem>>, vector<8x128xf32>,
    return
  }
  func.func @transform_0(%arg0: i32) -> (i32, i32) {
    %c0_i32 = arith.constant 0 : i32
    %c0_i32_0 = arith.constant 0 : i32
    return %arg0, %c0_i32 : i32, i32
  }
  func.func @transform_1(%arg0: i32) -> (i32, i32) {
    %c0_i32 = arith.constant 0 : i32
    %c0_i32_0 = arith.constant 0 : i32
    %c0_i32_1 = arith.constant 0 : i32
    return %c0_i32, %c0_i32_0 : i32, i32
  }
  func.func @transform_2(%arg0: i32) -> (i32, i32) {
    %c0_i32 = arith.constant 0 : i32
    %c0_i32_0 = arith.constant 0 : i32
    %c0_i32_1 = arith.constant 0 : i32
    return %c0_i32, %c0_i32_0 : i32, i32
  }
  func.func @transform_3(%arg0: i32) -> (i32, i32) {
    %c0_i32 = arith.constant 0 : i32
    %c0_i32_0 = arith.constant 0 : i32
    return %arg0, %c0_i32 : i32, i32
  }
}

</mosaic_0001>

<llo_original>
// kernel: tpu_custom_call.1
$region0: #{tpu_custom_call.1}
  #allocation0 [shape = 'u32[]', space=smem, size = 0x4, offset = 0x4, fixed_abs, tag = 'smem constant byte address 0x4 - core index']
  #allocation1 [shape = 'u32[72,128]{1,0:T(1,128)}', space=vmem, size = 0x9000, scoped, tag = 'internal scratch']
  %s0 = inlined_call_operand.hbm [shape: f32[16,128], index: 0, kind: input, shape index: {}]
  %s1 = inlined_call_operand.hbm [shape: f32[1,128], index: 1, kind: input, shape index: {}]
  %s2 = inlined_call_operand.vmem [shape: f32[1,128], index: 2, kind: input, shape index: {}]
  %s3 = inlined_call_operand.hbm [shape: f32[16,128], index: 3, kind: output, shape index: {}]
  %s4 = sld [smem:[#allocation0]]
  $region53: #{tpu_custom_call.1} parent=0
    _
  %s6 = ssub.s32 1, %s4
  %s7 = scalar_select 0, %s6, %s4
  $region1: #{tpu_custom_call.1} parent=0
    #allocation2 [shape = 'u8[8192]{0}', space=vmem, size = 0x2000, scoped, tag = 'input window, operand 0']
    #allocation3 [shape = 's32[2]{0}', space=sflag, size = 0x8, scoped, tag = 'scoped memory for tpu_custom_call.1']
    #allocation4 [shape = 's32[2]{0}', space=sflag, size = 0x8, scoped, tag = 'scoped memory for tpu_custom_call.1']
    #allocation5 [shape = 'u8[512]{0}', space=vmem, size = 0x400, scoped, tag = 'input window, operand 1, single buffered']
    #allocation6 [shape = 's32[1]{0}', space=sflag, size = 0x4, scoped, tag = 'scoped memory for tpu_custom_call.1']
    #allocation7 [shape = 'u8[8192]{0}', space=vmem, size = 0x2000, scoped, tag = 'output window, operand 0']
    %8 = vsyncpa [#allocation3], 0
    %s9 = scalar_lea.sflag [#allocation3], 1
    %10 = vsyncpa %s9, 0
    %11 = vsyncpa [#allocation6], 0
    %12 = vsyncpa [#allocation4], 0
    %s13 = scalar_lea.sflag [#allocation4], 1
    %14 = vsyncpa %s13, 0
    loop: start=0, step=1, limit=4
    $region2: #{tpu_custom_call.1} parent=1 // loop_pre_header
      _
    $region3: #{tpu_custom_call.1} parent=1 // loop_header
      %s16 = sphi 0, %s20
      %p17 = scmp.ge.s32.totalorder %s16, 4
      %s26 = sphi 0, %s28
      %s29 = sphi 0, %s26
      %s30 = sphi 0, %s29
      %s46 = sphi 0, %s30
      %s50 = sphi 0, %s50
      %s52 = sphi 0, %s50
      %s53 = sphi 0, %s52
      %s67 = sphi 0, %s53
      %s71 = sphi 0, %s71
      %s73 = sphi 0, %s71
      %s74 = sphi 0, %s73
      %s88 = sphi 0, %s74
      %s94 = sphi 0, %s96
      %s97 = sphi 0, %s94
      %s98 = sphi 0, %s97
      %s114 = sphi 0, %s98
    $region4: #{tpu_custom_call.1} parent=1 // loop_header_branch
      %19 = sbr.rel (%p17) target = $region8
    $region5: #{tpu_custom_call.1} parent=1 // loop_body
      %s21 = ssub.s32 %s16, 1
      %s22 = ssub.s32 %s16, 2
      %s23 = sadd.s32 %s16, 1
      %s24 = ssub.s32 %s16, %s23
      %p25 = scmp.eq.s32.totalorder %s24, 0
      %s27 = sadd.s32 %s26, 1
      %s28 = scalar_select %p25, %s26, %s27
      %p31 = pneg %p25
      %p32 = scmp.eq.s32.totalorder %s16, 1
      %p33 = por %p31, %p32
      %p34 = scmp.ne.s32.totalorder %s26, %s29
      %p35 = scmp.eq.s32.totalorder %s16, 0
      %p36 = por %p34, %p35
      %p37 = scmp.ne.s32.totalorder %s26, %s29
      %p38 = scmp.eq.s32.totalorder %s21, 1
      %p39 = por %p37, %p38
      %p40 = scmp.ne.s32.totalorder %s29, %s30
      %p41 = scmp.eq.s32.totalorder %s21, 0
      %p42 = por %p40, %p41
      %p43 = scmp.ne.s32.totalorder %s29, %s30
      %p44 = scmp.eq.s32.totalorder %s22, 1
      %p45 = por %p43, %p44
      %p47 = scmp.ne.s32.totalorder %s30, %s46
      %p48 = scmp.eq.s32.totalorder %s22, 0
      %p49 = por %p47, %p48
      %s51 = sadd.s32 %s50, 1
      %p54 = scmp.eq.s32.totalorder %s16, 1
      %p55 = scmp.ne.s32.totalorder %s50, %s52
      %p56 = scmp.eq.s32.totalorder %s16, 0
      %p57 = por %p55, %p56
      %p58 = scmp.ne.s32.totalorder %s50, %s52
      %p59 = scmp.eq.s32.totalorder %s21, 1
      %p60 = por %p58, %p59
      %p61 = scmp.ne.s32.totalorder %s52, %s53
      %p62 = scmp.eq.s32.totalorder %s21, 0
      %p63 = por %p61, %p62
      %p64 = scmp.ne.s32.totalorder %s52, %s53
      %p65 = scmp.eq.s32.totalorder %s22, 1
      %p66 = por %p64, %p65
      %p68 = scmp.ne.s32.totalorder %s53, %s67
      %p69 = scmp.eq.s32.totalorder %s22, 0
      %p70 = por %p68, %p69
      %s72 = sadd.s32 %s71, 1
      %p75 = scmp.eq.s32.totalorder %s16, 1
      %p76 = scmp.ne.s32.totalorder %s71, %s73
      %p77 = scmp.eq.s32.totalorder %s16, 0
      %p78 = por %p76, %p77
      %p79 = scmp.ne.s32.totalorder %s71, %s73
      %p80 = scmp.eq.s32.totalorder %s21, 1
      %p81 = por %p79, %p80
      %p82 = scmp.ne.s32.totalorder %s73, %s74
      %p83 = scmp.eq.s32.totalorder %s21, 0
      %p84 = por %p82, %p83
      %p85 = scmp.ne.s32.totalorder %s73, %s74
      %p86 = scmp.eq.s32.totalorder %s22, 1
      %p87 = por %p85, %p86
      %p89 = scmp.ne.s32.totalorder %s74, %s88
      %p90 = scmp.eq.s32.totalorder %s22, 0
      %p91 = por %p89, %p90
      %s92 = ssub.s32 %s16, %s23
      %p93 = scmp.eq.s32.totalorder %s92, 0
      %s95 = sadd.s32 %s94, 1
      %s96 = scalar_select %p93, %s94, %s95
      %p99 = pneg %p93
      %p100 = scmp.eq.s32.totalorder %s16, 1
      %p101 = por %p99, %p100
      %p102 = scmp.ne.s32.totalorder %s94, %s97
      %p103 = scmp.eq.s32.totalorder %s16, 0
      %p104 = por %p102, %p103
      %p105 = scmp.ne.s32.totalorder %s94, %s97
      %p106 = scmp.eq.s32.totalorder %s21, 1
      %p107 = por %p105, %p106
      %p108 = scmp.ne.s32.totalorder %s97, %s98
      %p109 = scmp.eq.s32.totalorder %s21, 0
      %p110 = por %p108, %p109
      %p111 = scmp.ne.s32.totalorder %s97, %s98
      %p112 = scmp.eq.s32.totalorder %s22, 1
      %p113 = por %p111, %p112
      %p115 = scmp.ne.s32.totalorder %s98, %s114
      %p116 = scmp.eq.s32.totalorder %s22, 0
      %p117 = por %p115, %p116
      %p118 = scmp.le.s32.totalorder 1, %s16
      %p119 = scmp.lt.s32.totalorder %s16, 3
      %p120 = pnand %p118, %p119
      %p121 = pneg %p120
      // Predicated region
      $region9: #{tpu_custom_call.1} parent=5 // pred_check
        _
      $region10: #{tpu_custom_call.1} parent=5 // pred_check_branch
        %123 = sbr.rel (%p120) target = $region12
      $region11: #{tpu_custom_call.1} parent=5 // pred_region
        %s124 = ssub.s32 %s16, 1
        // Predicated region
        $region13: #{tpu_custom_call.1} parent=11 // pred_check
          %p125 = pneg %p63
        $region14: #{tpu_custom_call.1} parent=11 // pred_check_branch
          %127 = sbr.rel (%p125) target = $region16
        $region15: #{tpu_custom_call.1} parent=11 // pred_region
          %129 = vsyncadd [#allocation6], 0
          %s131 = sshll.u32 %s1, 4
          %s132 = int_to_ptr.hbm [resolvable:$true] %s131
          %s133 = sshll.u32 [#allocation5], 4
          %s134 = int_to_ptr.vmem [resolvable:$true] %s133
          %136 = dma.hbm_to_vmem [thread:$0]  %s132, 16, %s134, [#allocation6]
        $region16: #{tpu_custom_call.1} parent=11 // pred_fallthru
          _
        // Predicated region
        $region17: #{tpu_custom_call.1} parent=11 // pred_check
          %p137 = pneg %p84
        $region18: #{tpu_custom_call.1} parent=11 // pred_check_branch
          %139 = sbr.rel (%p137) target = $region20
        $region19: #{tpu_custom_call.1} parent=11 // pred_region
          _
        $region20: #{tpu_custom_call.1} parent=11 // pred_fallthru
          _
      $region12: #{tpu_custom_call.1} parent=5 // pred_fallthru
        _
      %p140 = scmp.lt.s32.totalorder %s16, 2
      // Predicated region
      $region21: #{tpu_custom_call.1} parent=5 // pred_check
        %p141 = pneg %p140
      $region22: #{tpu_custom_call.1} parent=5 // pred_check_branch
        %143 = sbr.rel (%p141) target = $region24
      $region23: #{tpu_custom_call.1} parent=5 // pred_region
        // Predicated region
        $region25: #{tpu_custom_call.1} parent=23 // pred_check
          %p144 = pneg %p36
        $region26: #{tpu_custom_call.1} parent=23 // pred_check_branch
          %146 = sbr.rel (%p144) target = $region28
        $region27: #{tpu_custom_call.1} parent=23 // pred_region
          %s147 = sand.u32 %s26, 1
          %s148 = scalar_lea.sflag [#allocation3], %s147
          %s149 = sand.u32 %s26, 1
          %s150 = smul.addr %s149, 8
          %s151 = scalar_lea.vmem [#allocation2], %s150
          %153 = vsyncadd %s148, 0
          %s154 = smul.addr %s16, 8
          %s155 = scalar_lea.hbm %s0, %s154
          %s157 = sshll.u32 %s155, 4
          %s158 = int_to_ptr.hbm [resolvable:$true] %s157
          %s159 = sshll.u32 %s151, 4
          %s160 = int_to_ptr.vmem [resolvable:$true] %s159
          %162 = dma.hbm_to_vmem [thread:$0]  %s158, 128, %s160, %s148
        $region28: #{tpu_custom_call.1} parent=23 // pred_fallthru
          _
      $region24: #{tpu_custom_call.1} parent=5 // pred_fallthru
        _
      %p163 = scmp.le.s32.totalorder 1, %s16
      %p164 = scmp.lt.s32.totalorder %s16, 3
      %p165 = pnand %p163, %p164
      %p166 = pneg %p165
      // Predicated region
      $region29: #{tpu_custom_call.1} parent=5 // pred_check
        _
      $region30: #{tpu_custom_call.1} parent=5 // pred_check_branch
        %168 = sbr.rel (%p165) target = $region32
      $region31: #{tpu_custom_call.1} parent=5 // pred_region
        %s169 = ssub.s32 %s16, 1
        %s170 = sand.u32 %s29, 1
        %s171 = scalar_lea.sflag [#allocation3], %s170
        %s172 = sand.u32 %s29, 1
        %s173 = smul.addr %s172, 8
        %s174 = scalar_lea.vmem [#allocation2], %s173
        // Predicated region
        $region33: #{tpu_custom_call.1} parent=31 // pred_check
          %p175 = pneg %p42
        $region34: #{tpu_custom_call.1} parent=31 // pred_check_branch
          %177 = sbr.rel (%p175) target = $region36
        $region35: #{tpu_custom_call.1} parent=31 // pred_region
          %179 = dma.done %s171, 128
        $region36: #{tpu_custom_call.1} parent=31 // pred_fallthru
          _
        // Predicated region
        $region37: #{tpu_custom_call.1} parent=31 // pred_check
          %p180 = pneg %p63
        $region38: #{tpu_custom_call.1} parent=31 // pred_check_branch
          %182 = sbr.rel (%p180) target = $region40
        $region39: #{tpu_custom_call.1} parent=31 // pred_region
          %184 = dma.done [#allocation6], 16
        $region40: #{tpu_custom_call.1} parent=31 // pred_fallthru
          _
        %s185 = sand.u32 %s29, 1
        %s186 = scalar_lea.sflag [#allocation3], %s185
        %s187 = sand.u32 %s29, 1
        %s188 = smul.addr %s187, 8
        %s189 = scalar_lea.vmem [#allocation2], %s188
        %p190 = pneg %p42
        %p191 = pneg %p39
        %p192 = pneg %p63
        %p193 = pneg %p60
        %p194 = pneg %p84
        %p195 = pneg %p81
        %p196 = pneg %p110
        %p197 = pneg %p107
        %s198 = sand.u32 %s97, 1
        %s199 = scalar_lea.sflag [#allocation4], %s198
        %s200 = sand.u32 %s97, 1
        %s201 = smul.addr %s200, 8
        %s202 = scalar_lea.vmem [#allocation7], %s201
        %v203 = vld [vmem:[%s174] sm:$0xff]
        %204 = vadd.xlane.f32.xlu0 %v203
        %v205 = vpop.xlane.xlu0 %204
        %v206 = vrcp.pop 128.0
        %v207 = vmul.f32 128.0, %v206
        %v208 = vsub.f32 1.0, %v207
        %v209 = vmul.f32 %v206, %v208
        %v210 = vadd.f32 %v206, %v209
        %vm211 = vweird.f32 %v206
        %v212 = vsel %vm211, %v206, %v210
        %v213 = vmul.f32 %v205, %v212
        %v214 = vsub.f32 %v203, %v213
        %v215 = vmul.f32 %v214, %v214
        %216 = vadd.xlane.f32.xlu0 %v215
        %v217 = vpop.xlane.xlu0 %216
        %v218 = vmul.f32 %v217, 0.007874016
        %v219 = vrsqrt.pop %v218
        %v220 = vmul.f32 %v219, %v218
        %v221 = vmul.f32 %v220, %v219
        %v222 = vmul.f32 0.5, %v221
        %v223 = vsub.f32 1.5, %v222
        %v224 = vmul.f32 %v219, %v223
        %v225 = vmul.f32 %v218, %v224
        %vm226 = vcmp.eq.f32.partialorder %v218, inf
        %v227 = vsel %vm226, %v218, %v225
        %vm228 = vcmp.eq.f32.partialorder %v218, 0.0
        %v229 = vand.u32 %v218, 2147483648
        %v230 = vsel %vm228, %v229, %v227
        %v231 = vadd.f32 %v230, 1e-07
        %v232 = vrcp.pop %v231
        %v233 = vmul.f32 %v231, %v232
        %v234 = vsub.f32 1.0, %v233
        %v235 = vmul.f32 %v232, %v234
        %v236 = vadd.f32 %v232, %v235
        %vm237 = vweird.f32 %v231
        %vm238 = vweird.f32 %v232
        %vm239 = vmor %vm237, %vm238
        %v240 = vsel %vm239, %v232, %v236
        %v241 = vand.u32 2147483647, %v231
        %vm242 = vcmp.eq.f32.partialorder %v241, 8.507059e+37
        %v243 = vand.u32 %v231, 2147483648
        %v244 = vor.u32 1.1754944e-38, %v243
        %v245 = vsel %vm242, %v244, %v240
        %v246 = vmul.f32 1.0, %v245
        %v247 = vmul.f32 %v214, %v246
        %v248 = vld [vmem:[#allocation5] sm:$0x1]
        %v250 = vperm.slane %v248, 0
        %v252 = vmul.f32 %v247, %v250
        %v253 = vld [vmem:[%s2] sm:$0x1]
        %v255 = vperm.slane %v253, 0
        %v257 = vadd.f32 %v252, %v255
        %258 = vst [vmem:[%s202] sm:$0xff] %v257
        %s259 = sand.u32 %s97, 1
        %s260 = scalar_lea.sflag [#allocation4], %s259
        %s261 = sand.u32 %s97, 1
        %s262 = smul.addr %s261, 8
        %s263 = scalar_lea.vmem [#allocation7], %s262
        // Predicated region
        $region41: #{tpu_custom_call.1} parent=31 // pred_check
          %p264 = pneg %p107
        $region42: #{tpu_custom_call.1} parent=31 // pred_check_branch
          %266 = sbr.rel (%p264) target = $region44
        $region43: #{tpu_custom_call.1} parent=31 // pred_region
          %268 = vsyncadd %s260, 0
          %s269 = smul.addr %s21, 8
          %s270 = scalar_lea.hbm %s3, %s269
          %s272 = sshll.u32 %s263, 4
          %s273 = int_to_ptr.vmem [resolvable:$true] %s272
          %s274 = sshll.u32 %s270, 4
          %s275 = int_to_ptr.hbm [resolvable:$true] %s274
          %277 = dma.vmem_to_hbm [thread:$0]  %s273, 128, %s275, %s260
        $region44: #{tpu_custom_call.1} parent=31 // pred_fallthru
          _
      $region32: #{tpu_custom_call.1} parent=5 // pred_fallthru
        _
      %p278 = scmp.le.s32.totalorder 2, %s16
      // Predicated region
      $region45: #{tpu_custom_call.1} parent=5 // pred_check
        %p279 = pneg %p278
      $region46: #{tpu_custom_call.1} parent=5 // pred_check_branch
        %281 = sbr.rel (%p279) target = $region48
      $region47: #{tpu_custom_call.1} parent=5 // pred_region
        %s282 = ssub.s32 %s16, 2
        // Predicated region
        $region49: #{tpu_custom_call.1} parent=47 // pred_check
          %p283 = pneg %p113
        $region50: #{tpu_custom_call.1} parent=47 // pred_check_branch
          %285 = sbr.rel (%p283) target = $region52
        $region51: #{tpu_custom_call.1} parent=47 // pred_region
          %s286 = sand.u32 %s98, 1
          %s287 = scalar_lea.sflag [#allocation4], %s286
          %s288 = sand.u32 %s98, 1
          %s289 = smul.addr %s288, 8
          %s290 = scalar_lea.vmem [#allocation7], %s289
          %292 = dma.done %s287, 128
        $region52: #{tpu_custom_call.1} parent=47 // pred_fallthru
          _
      $region48: #{tpu_custom_call.1} parent=5 // pred_fallthru
        _
    $region6: #{tpu_custom_call.1} parent=1 // loop_footer
      %s20 = sadd.s32 1, %s16
    $region7: #{tpu_custom_call.1} parent=1 // loop_footer_branch
      %15 = sbr.rel target = $region3
    $region8: #{tpu_custom_call.1} parent=1 // loop_exit
      _
    %293 = vsyncpa [#allocation3], 1
    %s294 = scalar_lea.sflag [#allocation3], 1
    %295 = vsyncpa %s294, 1
    %296 = vsyncpa [#allocation6], 1
    %297 = vsyncpa [#allocation4], 1
    %s298 = scalar_lea.sflag [#allocation4], 1
    %299 = vsyncpa %s298, 1

</llo_original>
